<compile_context>
chip_gen: v5e
topology: v5e:2x2
jax: 0.10.0
libtpu: 0.0.40
codegen_flags: <defaults>
</compile_context>

<pallas_src>
import jax
import jax.numpy as jnp
from jax.experimental import pallas as pl
from jax.experimental.pallas import tpu as pltpu

BN_EPS = 1e-5  # PyTorch BatchNorm default eps


# ---------------------------------------------------------------------------
# Kernel: one (C, tn) lane-tile of the Linear2Layer bottleneck + residual.
# ---------------------------------------------------------------------------
def _linear2_kernel(x_ref, wa_ref, ba_ref, wb_ref, bb_ref, o_ref):
    x = x_ref[...]                                            # (C, tn) bf16

    # net1: 1x1 conv + folded BN + ReLU — bf16 MXU operands, f32 accumulate.
    h = jnp.dot(wa_ref[...], x,
                preferred_element_type=jnp.float32) + ba_ref[...]
    h = jnp.maximum(h, 0.0)                                   # (C/2, tn) f32

    # net2: 1x1 conv + folded BN.
    z = jnp.dot(wb_ref[...], h.astype(jnp.bfloat16),
                preferred_element_type=jnp.float32) + bb_ref[...]

    # residual + ReLU in f32, store bf16 (lane-dense, unmasked vst).
    o_ref[...] = jnp.maximum(z + x.astype(jnp.float32), 0.0).astype(o_ref.dtype)


# ---------------------------------------------------------------------------
# Wrapper: zero-copy layout + pallas_call plumbing.
# ---------------------------------------------------------------------------
def _pick_lane_tile(hw, tile_n):
    """Largest 128-multiple <= tile_n that divides hw; else the full extent."""
    cand = min(tile_n, hw)
    cand -= cand % 128
    while cand >= 128:
        if hw % cand == 0:
            return cand
        cand -= 128
    return hw  # block == full array dim is always legal (may use masked stores)


def linear2layer_forward(x, params, *, tile_n=1024):
    B, C, H, W = x.shape
    C2 = C // 2
    HW = H * W

    x = x.astype(jnp.bfloat16)          # no-op if the caller already passes bf16
    x_v = x.reshape(B, C, HW)           # free reshape, no data movement

    tn = _pick_lane_tile(HW, tile_n)
    grid = (B, HW // tn)

    # VMEM budget: double-buffered bf16 in/out tiles + resident weights + slack.
    tile_bytes = C * tn * 2
    weight_bytes = 2 * (C2 * C) * 2 + (C2 + C) * 4
    vmem_limit = min(max(8 * tile_bytes + weight_bytes + (4 << 20), 32 << 20),
                     100 << 20)

    grid_spec = pltpu.PrefetchScalarGridSpec(
        num_scalar_prefetch=0,
        grid=grid,
        in_specs=[
            pl.BlockSpec((pl.Squeezed(), C, tn), lambda b, i: (b, 0, i)),  # x tile
            pl.BlockSpec((C2, C), lambda b, i: (0, 0)),   # wa (BN folded, bf16)
            pl.BlockSpec((C2, 1), lambda b, i: (0, 0)),   # ba (f32)
            pl.BlockSpec((C, C2), lambda b, i: (0, 0)),   # wb (BN folded, bf16)
            pl.BlockSpec((C, 1), lambda b, i: (0, 0)),    # bb (f32)
        ],
        out_specs=pl.BlockSpec((pl.Squeezed(), C, tn), lambda b, i: (b, 0, i)),
    )

    out = pl.pallas_call(
        _linear2_kernel,
        out_shape=jax.ShapeDtypeStruct((B, C, HW), jnp.bfloat16),
        grid_spec=grid_spec,
        compiler_params=pltpu.CompilerParams(
            dimension_semantics=("parallel", "parallel"),
            vmem_limit_bytes=vmem_limit,
        ),
        # NOTE: input_output_aliases={0: 0} would save one C*HW HBM allocation
        # (each step fully reads its x block before writeback) but clobbers the
        # caller's x, so it is only safe when the caller donates the buffer.
    )(x_v, params["wa_f"], params["ba_f"], params["wb_f"], params["bb_f"])

    return out.reshape(B, C, H, W)


# ---------------------------------------------------------------------------
# Deterministic parameter construction (shapes from the module __init__).
# BatchNorm (eval) is folded into the 1x1-conv weights / biases.
# ---------------------------------------------------------------------------
def make_params(in_channels, key):
    C, C2 = in_channels, in_channels // 2
    f32 = jnp.float32
    keys = jax.random.split(key, 12)

    def nrm(k, shape, scale=0.1):
        return scale * jax.random.normal(k, shape, dtype=f32)

    # net1: Conv2d(C, C/2, 1, bias=True) + BatchNorm2d(C/2)
    wa, ba = nrm(keys[0], (C2, C)), nrm(keys[1], (C2,))
    ga, bea = 1.0 + nrm(keys[2], (C2,)), nrm(keys[3], (C2,))
    rma = nrm(keys[4], (C2,))
    rva = jax.random.uniform(keys[5], (C2,), dtype=f32, minval=0.5, maxval=1.5)
    sa = ga / jnp.sqrt(rva + BN_EPS)
    wa_f, ba_f = wa * sa[:, None], sa * (ba - rma) + bea

    # net2: Conv2d(C/2, C, 1, bias=True) + BatchNorm2d(C)
    wb, bb = nrm(keys[6], (C, C2)), nrm(keys[7], (C,))
    gb, beb = 1.0 + nrm(keys[8], (C,)), nrm(keys[9], (C,))
    rmb = nrm(keys[10], (C,))
    rvb = jax.random.uniform(keys[11], (C,), dtype=f32, minval=0.5, maxval=1.5)
    sb = gb / jnp.sqrt(rvb + BN_EPS)
    wb_f, bb_f = wb * sb[:, None], sb * (bb - rmb) + beb

    return dict(
        wa_f=wa_f.astype(jnp.bfloat16), ba_f=ba_f[:, None],
        wb_f=wb_f.astype(jnp.bfloat16), bb_f=bb_f[:, None],
        raw=dict(wa=wa, ba=ba, ga=ga, bea=bea, rma=rma, rva=rva,
                 wb=wb, bb=bb, gb=gb, beb=beb, rmb=rmb, rvb=rvb),
    )


# Pure-JAX reference (mirrors the PyTorch forward step by step, in f32).
def linear2layer_reference(x, params):
    p = params["raw"]
    x = x.astype(jnp.float32)

    def conv1x1(v, w, b):
        return jnp.einsum("oc,bchw->bohw", w, v) + b[None, :, None, None]

    def bn(v, g, be, rm, rv):
        return (g[None, :, None, None] * (v - rm[None, :, None, None])
                / jnp.sqrt(rv[None, :, None, None] + BN_EPS)
                + be[None, :, None, None])

    h = jax.nn.relu(bn(conv1x1(x, p["wa"], p["ba"]),
                       p["ga"], p["bea"], p["rma"], p["rva"]))
    z = bn(conv1x1(h, p["wb"], p["bb"]),
           p["gb"], p["beb"], p["rmb"], p["rvb"])
    return jax.nn.relu(z + x)


if __name__ == "__main__":
    B, C, H, W = 2, 32, 16, 16          # HW = 256 -> one 256-wide lane tile / batch elem

    key = jax.random.PRNGKey(0)
    kx, kp = jax.random.split(key)
    x = jax.random.normal(kx, (B, C, H, W), dtype=jnp.float32).astype(jnp.bfloat16)
    params = make_params(C, kp)

    out = jax.block_until_ready(linear2layer_forward(x, params))
    assert out.shape == (B, C, H, W)
    assert out.dtype == jnp.bfloat16

    ref = linear2layer_reference(x, params)
    out_f32 = out.astype(jnp.float32)
    max_err = float(jnp.max(jnp.abs(out_f32 - ref)))
    # bf16 matmul operands + bf16 activations/output vs the f32 reference.
    assert jnp.allclose(out_f32, ref, rtol=3e-2, atol=3e-2), max_err

    print("KERNEL_OK")
</pallas_src>

<mosaic_0001>
module attributes {stable_mosaic.version = 11 : i64} {
  func.func @_linear2_kernel(%arg0: i32, %arg1: i32, %arg2: memref<1x32x256xbf16, #tpu.memory_space<vmem>>, %arg3: memref<16x32xbf16, #tpu.memory_space<vmem>>, %arg4: memref<16x1xf32, #tpu.memory_space<vmem>>, %arg5: memref<32x16xbf16, #tpu.memory_space<vmem>>, %arg6: memref<32x1xf32, #tpu.memory_space<vmem>>, %arg7: memref<1x32x256xbf16, #tpu.memory_space<vmem>>) attributes {dimension_semantics = [#tpu.dimension_semantics<parallel>, #tpu.dimension_semantics<parallel>], iteration_bounds = array<i64: 2, 1>, scalar_prefetch = 0 : i64, scratch_operands = 0 : i64, tpu.core_type = #tpu.core_type<tc>, window_params = [{transform_indices = @transform_0, window_bounds = array<i64: 1, 32, 256>}, {pipeline_mode = #tpu.pipeline_mode<synchronous>, transform_indices = @transform_1, window_bounds = array<i64: 16, 32>}, {pipeline_mode = #tpu.pipeline_mode<synchronous>, transform_indices = @transform_2, window_bounds = array<i64: 16, 1>}, {pipeline_mode = #tpu.pipeline_mode<synchronous>, transform_indices = @transform_3, window_bounds = array<i64: 32, 16>}, {pipeline_mode = #tpu.pipeline_mode<synchronous>, transform_indices = @transform_4, window_bounds = array<i64: 32, 1>}, {transform_indices = @transform_5, window_bounds = array<i64: 1, 32, 256>}]} {
    %c0 = arith.constant 0 : index
    %c0_0 = arith.constant 0 : index
    %c0_1 = arith.constant 0 : index
    %0 = vector.load %arg2[%c0, %c0_0, %c0_1] : memref<1x32x256xbf16, #tpu.memory_space<vmem>>, vector<1x32x256xbf16>
    %1 = vector.shape_cast %0 : vector<1x32x256xbf16> to vector<32x256xbf16>
    %c0_2 = arith.constant 0 : index
    %c0_3 = arith.constant 0 : index
    %2 = vector.load %arg3[%c0_2, %c0_3] : memref<16x32xbf16, #tpu.memory_space<vmem>>, vector<16x32xbf16>
    %cst = arith.constant dense<0.000000e+00> : vector<16x256xf32>
    %3 = tpu.matmul %2, %1, %cst {dimension_numbers = #tpu.dot_dimension_numbers<[1], [0], [0], [1], [0, 0, 1, 1], [], []>} : vector<16x32xbf16>, vector<32x256xbf16>, vector<16x256xf32> -> vector<16x256xf32>
    %c0_4 = arith.constant 0 : index
    %c0_5 = arith.constant 0 : index
    %4 = vector.load %arg4[%c0_4, %c0_5] : memref<16x1xf32, #tpu.memory_space<vmem>>, vector<16x1xf32>
    %5 = vector.broadcast %4 : vector<16x1xf32> to vector<16x256xf32>
    %6 = arith.addf %3, %5 : vector<16x256xf32>
    %cst_6 = arith.constant 0.000000e+00 : f32
    %7 = vector.broadcast %cst_6 : f32 to vector<16x256xf32>
    %8 = arith.maximumf %6, %7 : vector<16x256xf32>
    %c0_7 = arith.constant 0 : index
    %c0_8 = arith.constant 0 : index
    %9 = vector.load %arg5[%c0_7, %c0_8] : memref<32x16xbf16, #tpu.memory_space<vmem>>, vector<32x16xbf16>
    %10 = arith.truncf %8 : vector<16x256xf32> to vector<16x256xbf16>
    %cst_9 = arith.constant dense<0.000000e+00> : vector<32x256xf32>
    %11 = tpu.matmul %9, %10, %cst_9 {dimension_numbers = #tpu.dot_dimension_numbers<[1], [0], [0], [1], [0, 0, 1, 1], [], []>} : vector<32x16xbf16>, vector<16x256xbf16>, vector<32x256xf32> -> vector<32x256xf32>
    %c0_10 = arith.constant 0 : index
    %c0_11 = arith.constant 0 : index
    %12 = vector.load %arg6[%c0_10, %c0_11] : memref<32x1xf32, #tpu.memory_space<vmem>>, vector<32x1xf32>
    %13 = vector.broadcast %12 : vector<32x1xf32> to vector<32x256xf32>
    %14 = arith.addf %11, %13 : vector<32x256xf32>
    %15 = arith.extf %1 : vector<32x256xbf16> to vector<32x256xf32>
    %16 = arith.addf %14, %15 : vector<32x256xf32>
    %cst_12 = arith.constant 0.000000e+00 : f32
    %17 = vector.broadcast %cst_12 : f32 to vector<32x256xf32>
    %18 = arith.maximumf %16, %17 : vector<32x256xf32>
    %19 = arith.truncf %18 : vector<32x256xf32> to vector<32x256xbf16>
    %c0_13 = arith.constant 0 : index
    %c0_14 = arith.constant 0 : index
    %c0_15 = arith.constant 0 : index
    %20 = vector.load %arg7[%c0_13, %c0_14, %c0_15] : memref<1x32x256xbf16, #tpu.memory_space<vmem>>, vector<1x32x256xbf16>
    %21 = vector.shape_cast %20 : vector<1x32x256xbf16> to vector<32x256xbf16>
    %22 = vector.shape_cast %19 : vector<32x256xbf16> to vector<1x32x256xbf16>
    tpu.vector_store %arg7[%c0_13, %c0_14, %c0_15], %22 {strides = array<i32>} : memref<1x32x256xbf16, #tpu.memory_space<vmem>>, vector<1x32x256xbf16>,
    return
  }
  func.func @transform_0(%arg0: i32, %arg1: i32) -> (i32, i32, i32) {
    %c0_i32 = arith.constant 0 : i32
    %c0_i32_0 = arith.constant 0 : i32
    return %arg0, %c0_i32, %arg1 : i32, i32, i32
  }
  func.func @transform_1(%arg0: i32, %arg1: i32) -> (i32, i32) {
    %c0_i32 = arith.constant 0 : i32
    %c0_i32_0 = arith.constant 0 : i32
    %c0_i32_1 = arith.constant 0 : i32
    return %c0_i32, %c0_i32_0 : i32, i32
  }
  func.func @transform_2(%arg0: i32, %arg1: i32) -> (i32, i32) {
    %c0_i32 = arith.constant 0 : i32
    %c0_i32_0 = arith.constant 0 : i32
    %c0_i32_1 = arith.constant 0 : i32
    return %c0_i32, %c0_i32_0 : i32, i32
  }
  func.func @transform_3(%arg0: i32, %arg1: i32) -> (i32, i32) {
    %c0_i32 = arith.constant 0 : i32
    %c0_i32_0 = arith.constant 0 : i32
    %c0_i32_1 = arith.constant 0 : i32
    return %c0_i32, %c0_i32_0 : i32, i32
  }
  func.func @transform_4(%arg0: i32, %arg1: i32) -> (i32, i32) {
    %c0_i32 = arith.constant 0 : i32
    %c0_i32_0 = arith.constant 0 : i32
    %c0_i32_1 = arith.constant 0 : i32
    return %c0_i32, %c0_i32_0 : i32, i32
  }
  func.func @transform_5(%arg0: i32, %arg1: i32) -> (i32, i32, i32) {
    %c0_i32 = arith.constant 0 : i32
    %c0_i32_0 = arith.constant 0 : i32
    return %arg0, %c0_i32, %arg1 : i32, i32, i32
  }
}

</mosaic_0001>

<llo_original>
// kernel: tpu_custom_call.1
$region0: #{tpu_custom_call.1}
  #allocation0 [shape = 'u32[]', space=smem, size = 0x4, offset = 0x4, fixed_abs, tag = 'smem constant byte address 0x4 - core index']
  #allocation1 [shape = 'u32[72,128]{1,0:T(1,128)}', space=vmem, size = 0x9000, scoped, tag = 'internal scratch']
  %s0 = inlined_call_operand.hbm [shape: bf16[2,32,256], index: 0, kind: input, shape index: {}]
  %s1 = inlined_call_operand.vmem [shape: bf16[16,32], index: 1, kind: input, shape index: {}]
  %s2 = inlined_call_operand.vmem [shape: f32[16,1], index: 2, kind: input, shape index: {}]
  %s3 = inlined_call_operand.vmem [shape: bf16[32,16], index: 3, kind: input, shape index: {}]
  %s4 = inlined_call_operand.vmem [shape: f32[32,1], index: 4, kind: input, shape index: {}]
  %s5 = inlined_call_operand.hbm [shape: bf16[2,32,256], index: 5, kind: output, shape index: {}]
  %s6 = sld [smem:[#allocation0]]
  $region57: #{tpu_custom_call.1} parent=0
    _
  %s8 = ssub.s32 1, %s6
  %s9 = scalar_select 0, %s8, %s6
  $region1: #{tpu_custom_call.1} parent=0
    #allocation2 [shape = 'u8[32768]{0}', space=vmem, size = 0x8000, scoped, tag = 'input window, operand 0']
    #allocation3 [shape = 's32[2]{0}', space=sflag, size = 0x8, scoped, tag = 'scoped memory for tpu_custom_call.1']
    #allocation4 [shape = 's32[2]{0}', space=sflag, size = 0x8, scoped, tag = 'scoped memory for tpu_custom_call.1']
    #allocation5 [shape = 'u8[32768]{0}', space=vmem, size = 0x8000, scoped, tag = 'output window, operand 0']
    %10 = vsyncpa [#allocation3], 0
    %s11 = scalar_lea.sflag [#allocation3], 1
    %12 = vsyncpa %s11, 0
    %13 = vsyncpa [#allocation4], 0
    %s14 = scalar_lea.sflag [#allocation4], 1
    %15 = vsyncpa %s14, 0
    loop: start=0, step=1, limit=4
    $region2: #{tpu_custom_call.1} parent=1 // loop_pre_header
      _
    $region3: #{tpu_custom_call.1} parent=1 // loop_header
      %s17 = sphi 0, %s21
      %p18 = scmp.ge.s32.totalorder %s17, 4
      %s24 = sphi 0, %s36
      %s25 = sphi 0, %s32
      %s26 = sphi 0, %s24
      %s27 = sphi 0, %s25
      %s28 = sphi 0, %s26
      %s29 = sphi 0, %s27
      %s41 = sphi 0, %s43
      %s44 = sphi 0, %s41
      %s45 = sphi 0, %s44
      %s61 = sphi 0, %s45
      %s65 = sphi 0, %s65
      %s67 = sphi 0, %s65
      %s68 = sphi 0, %s67
      %s82 = sphi 0, %s68
      %s86 = sphi 0, %s86
      %s88 = sphi 0, %s86
      %s89 = sphi 0, %s88
      %s103 = sphi 0, %s89
      %s107 = sphi 0, %s107
      %s109 = sphi 0, %s107
      %s110 = sphi 0, %s109
      %s124 = sphi 0, %s110
      %s128 = sphi 0, %s128
      %s130 = sphi 0, %s128
      %s131 = sphi 0, %s130
      %s145 = sphi 0, %s131
      %s153 = sphi 0, %s155
      %s156 = sphi 0, %s153
      %s157 = sphi 0, %s156
      %s173 = sphi 0, %s157
    $region4: #{tpu_custom_call.1} parent=1 // loop_header_branch
      %20 = sbr.rel (%p18) target = $region8
    $region5: #{tpu_custom_call.1} parent=1 // loop_body
      %s22 = ssub.s32 %s17, 1
      %s23 = ssub.s32 %s17, 2
      %s30 = sadd.s32 1, %s25
      %p31 = scmp.ge.s32.totalorder %s30, 1
      %s32 = scalar_select %p31, 0, %s30
      %s33 = sadd.s32 1, %s24
      %s34 = scalar_select %p31, %s33, %s24
      %p35 = scmp.ge.s32.totalorder %s34, 2
      %s36 = scalar_select %p35, 0, %s34
      %s37 = ssub.s32 %s24, %s36
      %s38 = ssub.s32 %s25, %s32
      %s39 = sor.u32 %s37, %s38
      %p40 = scmp.eq.s32.totalorder %s39, 0
      %s42 = sadd.s32 %s41, 1
      %s43 = scalar_select %p40, %s41, %s42
      %p46 = pneg %p40
      %p47 = scmp.eq.s32.totalorder %s17, 1
      %p48 = por %p46, %p47
      %p49 = scmp.ne.s32.totalorder %s41, %s44
      %p50 = scmp.eq.s32.totalorder %s17, 0
      %p51 = por %p49, %p50
      %p52 = scmp.ne.s32.totalorder %s41, %s44
      %p53 = scmp.eq.s32.totalorder %s22, 1
      %p54 = por %p52, %p53
      %p55 = scmp.ne.s32.totalorder %s44, %s45
      %p56 = scmp.eq.s32.totalorder %s22, 0
      %p57 = por %p55, %p56
      %p58 = scmp.ne.s32.totalorder %s44, %s45
      %p59 = scmp.eq.s32.totalorder %s23, 1
      %p60 = por %p58, %p59
      %p62 = scmp.ne.s32.totalorder %s45, %s61
      %p63 = scmp.eq.s32.totalorder %s23, 0
      %p64 = por %p62, %p63
      %s66 = sadd.s32 %s65, 1
      %p69 = scmp.eq.s32.totalorder %s17, 1
      %p70 = scmp.ne.s32.totalorder %s65, %s67
      %p71 = scmp.eq.s32.totalorder %s17, 0
      %p72 = por %p70, %p71
      %p73 = scmp.ne.s32.totalorder %s65, %s67
      %p74 = scmp.eq.s32.totalorder %s22, 1
      %p75 = por %p73, %p74
      %p76 = scmp.ne.s32.totalorder %s67, %s68
      %p77 = scmp.eq.s32.totalorder %s22, 0
      %p78 = por %p76, %p77
      %p79 = scmp.ne.s32.totalorder %s67, %s68
      %p80 = scmp.eq.s32.totalorder %s23, 1
      %p81 = por %p79, %p80
      %p83 = scmp.ne.s32.totalorder %s68, %s82
      %p84 = scmp.eq.s32.totalorder %s23, 0
      %p85 = por %p83, %p84
      %s87 = sadd.s32 %s86, 1
      %p90 = scmp.eq.s32.totalorder %s17, 1
      %p91 = scmp.ne.s32.totalorder %s86, %s88
      %p92 = scmp.eq.s32.totalorder %s17, 0
      %p93 = por %p91, %p92
      %p94 = scmp.ne.s32.totalorder %s86, %s88
      %p95 = scmp.eq.s32.totalorder %s22, 1
      %p96 = por %p94, %p95
      %p97 = scmp.ne.s32.totalorder %s88, %s89
      %p98 = scmp.eq.s32.totalorder %s22, 0
      %p99 = por %p97, %p98
      %p100 = scmp.ne.s32.totalorder %s88, %s89
      %p101 = scmp.eq.s32.totalorder %s23, 1
      %p102 = por %p100, %p101
      %p104 = scmp.ne.s32.totalorder %s89, %s103
      %p105 = scmp.eq.s32.totalorder %s23, 0
      %p106 = por %p104, %p105
      %s108 = sadd.s32 %s107, 1
      %p111 = scmp.eq.s32.totalorder %s17, 1
      %p112 = scmp.ne.s32.totalorder %s107, %s109
      %p113 = scmp.eq.s32.totalorder %s17, 0
      %p114 = por %p112, %p113
      %p115 = scmp.ne.s32.totalorder %s107, %s109
      %p116 = scmp.eq.s32.totalorder %s22, 1
      %p117 = por %p115, %p116
      %p118 = scmp.ne.s32.totalorder %s109, %s110
      %p119 = scmp.eq.s32.totalorder %s22, 0
      %p120 = por %p118, %p119
      %p121 = scmp.ne.s32.totalorder %s109, %s110
      %p122 = scmp.eq.s32.totalorder %s23, 1
      %p123 = por %p121, %p122
      %p125 = scmp.ne.s32.totalorder %s110, %s124
      %p126 = scmp.eq.s32.totalorder %s23, 0
      %p127 = por %p125, %p126
      %s129 = sadd.s32 %s128, 1
      %p132 = scmp.eq.s32.totalorder %s17, 1
      %p133 = scmp.ne.s32.totalorder %s128, %s130
      %p134 = scmp.eq.s32.totalorder %s17, 0
      %p135 = por %p133, %p134
      %p136 = scmp.ne.s32.totalorder %s128, %s130
      %p137 = scmp.eq.s32.totalorder %s22, 1
      %p138 = por %p136, %p137
      %p139 = scmp.ne.s32.totalorder %s130, %s131
      %p140 = scmp.eq.s32.totalorder %s22, 0
      %p141 = por %p139, %p140
      %p142 = scmp.ne.s32.totalorder %s130, %s131
      %p143 = scmp.eq.s32.totalorder %s23, 1
      %p144 = por %p142, %p143
      %p146 = scmp.ne.s32.totalorder %s131, %s145
      %p147 = scmp.eq.s32.totalorder %s23, 0
      %p148 = por %p146, %p147
      %s149 = ssub.s32 %s24, %s36
      %s150 = ssub.s32 %s25, %s32
      %s151 = sor.u32 %s149, %s150
      %p152 = scmp.eq.s32.totalorder %s151, 0
      %s154 = sadd.s32 %s153, 1
      %s155 = scalar_select %p152, %s153, %s154
      %p158 = pneg %p152
      %p159 = scmp.eq.s32.totalorder %s17, 1
      %p160 = por %p158, %p159
      %p161 = scmp.ne.s32.totalorder %s153, %s156
      %p162 = scmp.eq.s32.totalorder %s17, 0
      %p163 = por %p161, %p162
      %p164 = scmp.ne.s32.totalorder %s153, %s156
      %p165 = scmp.eq.s32.totalorder %s22, 1
      %p166 = por %p164, %p165
      %p167 = scmp.ne.s32.totalorder %s156, %s157
      %p168 = scmp.eq.s32.totalorder %s22, 0
      %p169 = por %p167, %p168
      %p170 = scmp.ne.s32.totalorder %s156, %s157
      %p171 = scmp.eq.s32.totalorder %s23, 1
      %p172 = por %p170, %p171
      %p174 = scmp.ne.s32.totalorder %s157, %s173
      %p175 = scmp.eq.s32.totalorder %s23, 0
      %p176 = por %p174, %p175
      %p177 = scmp.le.s32.totalorder 1, %s17
      %p178 = scmp.lt.s32.totalorder %s17, 3
      %p179 = pnand %p177, %p178
      %p180 = pneg %p179
      // Predicated region
      $region9: #{tpu_custom_call.1} parent=5 // pred_check
        _
      $region10: #{tpu_custom_call.1} parent=5 // pred_check_branch
        %182 = sbr.rel (%p179) target = $region12
      $region11: #{tpu_custom_call.1} parent=5 // pred_region
        %s183 = ssub.s32 %s17, 1
        // Predicated region
        $region13: #{tpu_custom_call.1} parent=11 // pred_check
          %p184 = pneg %p78
        $region14: #{tpu_custom_call.1} parent=11 // pred_check_branch
          %186 = sbr.rel (%p184) target = $region16
        $region15: #{tpu_custom_call.1} parent=11 // pred_region
          _
        $region16: #{tpu_custom_call.1} parent=11 // pred_fallthru
          _
        // Predicated region
        $region17: #{tpu_custom_call.1} parent=11 // pred_check
          %p187 = pneg %p99
        $region18: #{tpu_custom_call.1} parent=11 // pred_check_branch
          %189 = sbr.rel (%p187) target = $region20
        $region19: #{tpu_custom_call.1} parent=11 // pred_region
          _
        $region20: #{tpu_custom_call.1} parent=11 // pred_fallthru
          _
        // Predicated region
        $region21: #{tpu_custom_call.1} parent=11 // pred_check
          %p190 = pneg %p120
        $region22: #{tpu_custom_call.1} parent=11 // pred_check_branch
          %192 = sbr.rel (%p190) target = $region24
        $region23: #{tpu_custom_call.1} parent=11 // pred_region
          _
        $region24: #{tpu_custom_call.1} parent=11 // pred_fallthru
          _
        // Predicated region
        $region25: #{tpu_custom_call.1} parent=11 // pred_check
          %p193 = pneg %p141
        $region26: #{tpu_custom_call.1} parent=11 // pred_check_branch
          %195 = sbr.rel (%p193) target = $region28
        $region27: #{tpu_custom_call.1} parent=11 // pred_region
          _
        $region28: #{tpu_custom_call.1} parent=11 // pred_fallthru
          _
      $region12: #{tpu_custom_call.1} parent=5 // pred_fallthru
        _
      %p196 = scmp.lt.s32.totalorder %s17, 2
      // Predicated region
      $region29: #{tpu_custom_call.1} parent=5 // pred_check
        %p197 = pneg %p196
      $region30: #{tpu_custom_call.1} parent=5 // pred_check_branch
        %199 = sbr.rel (%p197) target = $region32
      $region31: #{tpu_custom_call.1} parent=5 // pred_region
        // Predicated region
        $region33: #{tpu_custom_call.1} parent=31 // pred_check
          %p200 = pneg %p51
        $region34: #{tpu_custom_call.1} parent=31 // pred_check_branch
          %202 = sbr.rel (%p200) target = $region36
        $region35: #{tpu_custom_call.1} parent=31 // pred_region
          %s203 = sand.u32 %s41, 1
          %s204 = scalar_lea.sflag [#allocation3], %s203
          %s205 = sand.u32 %s41, 1
          %s206 = smul.addr %s205, 32
          %s207 = scalar_lea.vmem [#allocation2], %s206
          %s208 = smul.u32 2, %s25
          %210 = vsyncadd %s204, 0
          %s211 = smul.addr %s24, 8
          %s212 = sadd.s32 %s208, %s211
          %s213 = smul.addr %s212, 4
          %s214 = scalar_lea.hbm %s0, %s213
          %s215 = sshll.u32 %s214, 4
          %s216 = int_to_ptr.hbm [resolvable:$true] %s215
          %s217 = sshll.u32 %s207, 4
          %s218 = int_to_ptr.vmem [resolvable:$true] %s217
          %223 = dma.hbm_to_vmem [thread:$0]  %s216, 512, %s218, %s204, 128, 128, 8
        $region36: #{tpu_custom_call.1} parent=31 // pred_fallthru
          _
      $region32: #{tpu_custom_call.1} parent=5 // pred_fallthru
        _
      %p224 = scmp.le.s32.totalorder 1, %s17
      %p225 = scmp.lt.s32.totalorder %s17, 3
      %p226 = pnand %p224, %p225
      %p227 = pneg %p226
      // Predicated region
      $region37: #{tpu_custom_call.1} parent=5 // pred_check
        _
      $region38: #{tpu_custom_call.1} parent=5 // pred_check_branch
        %229 = sbr.rel (%p226) target = $region40
      $region39: #{tpu_custom_call.1} parent=5 // pred_region
        %s230 = ssub.s32 %s17, 1
        %s231 = sand.u32 %s44, 1
        %s232 = scalar_lea.sflag [#allocation3], %s231
        %s233 = sand.u32 %s44, 1
        %s234 = smul.addr %s233, 32
        %s235 = scalar_lea.vmem [#allocation2], %s234
        // Predicated region
        $region41: #{tpu_custom_call.1} parent=39 // pred_check
          %p236 = pneg %p57
        $region42: #{tpu_custom_call.1} parent=39 // pred_check_branch
          %238 = sbr.rel (%p236) target = $region44
        $region43: #{tpu_custom_call.1} parent=39 // pred_region
          %240 = dma.done %s232, 512
        $region44: #{tpu_custom_call.1} parent=39 // pred_fallthru
          _
        %s241 = sand.u32 %s44, 1
        %s242 = scalar_lea.sflag [#allocation3], %s241
        %s243 = sand.u32 %s44, 1
        %s244 = smul.addr %s243, 32
        %s245 = scalar_lea.vmem [#allocation2], %s244
        %p246 = pneg %p57
        %p247 = pneg %p54
        %p248 = pneg %p78
        %p249 = pneg %p75
        %p250 = pneg %p99
        %p251 = pneg %p96
        %p252 = pneg %p120
        %p253 = pneg %p117
        %p254 = pneg %p141
        %p255 = pneg %p138
        %p256 = pneg %p169
        %p257 = pneg %p166
        %s258 = sand.u32 %s156, 1
        %s259 = scalar_lea.sflag [#allocation4], %s258
        %s260 = sand.u32 %s156, 1
        %s261 = smul.addr %s260, 32
        %s262 = scalar_lea.vmem [#allocation5], %s261
        %s263 = smul.u32 2, %s27
        %s264 = smul.u32 2, %s27
        %v266 = vld [vmem:[%s235] sm:$0xff]
        %v267 = vld [vmem:[%s235 + $0x8] sm:$0xff]
        %v268 = vld [vmem:[%s235 + $0x10] sm:$0xff]
        %v269 = vld [vmem:[%s235 + $0x18] sm:$0xff]
        %v270 = vld [vmem:[%s1] sm:$0xf]
        %v271 = vld [vmem:[%s1 + $0x4] sm:$0xf]
        %v272 = vld [vmem:[%s2] sm:$0xff]
        %v273 = vld [vmem:[%s2 + $0x8] sm:$0xff]
        %275 = vset.pattern.permute.xlu0 0
        %276 = vperm.xlu0 %275, %v272
        %v277 = vpop.permute.xlu0 %276
        %280 = vset.pattern.permute.xlu0 0
        %281 = vperm.xlu0 %280, %v273
        %v282 = vpop.permute.xlu0 %281
        %v286 = vunpack.c.l.b16 %v270
        %v287 = vunpack.c.l.b16 %v271
        %v288 = vpack.c.b16 %v287, %v286
        %v293 = vunpack.c.l.b16 %v266
        %v294 = vunpack.c.h.b16 %v266
        %v295 = vunpack.c.l.b16 %v267
        %v296 = vunpack.c.h.b16 %v267
        %v297 = vunpack.c.l.b16 %v268
        %v298 = vunpack.c.h.b16 %v268
        %v299 = vunpack.c.l.b16 %v269
        %v300 = vunpack.c.h.b16 %v269
        %v301 = vpack.c.b16 %v295, %v293
        %v302 = vpack.c.b16 %v296, %v294
        %v303 = vpack.c.b16 %v299, %v297
        %v304 = vpack.c.b16 %v300, %v298
        %vm309 = vcmask 261120
        %v311 = vsel %vm309, %v288, 0
        %313 = vmatpush.bf16.msra.mxu0 0
        %314 = vmatpush.bf16.msra.mxu0 0
        %315 = vmatpush.bf16.msra.mxu0 0
        %316 = vmatpush.bf16.msra.mxu0 0
        %317 = vmatpush.bf16.msra.mxu0 0
        %318 = vmatpush.bf16.msra.mxu0 0
        %319 = vmatpush.bf16.msra.mxu0 %v303
        %320 = vmatpush.bf16.msra.mxu0 %v301
        %321 = vmatmul.bf16.gmra.mxu0 %v311
        %v322 = vpop.f32.mrf.mxu0
        %v323 = vadd.f32 %v277, %v322
        %v324 = vpop.f32.mrf.mxu0
        %v325 = vadd.f32 %v282, %v324
        %326 = vdwg.mxu0
        %327 = vmatpush.bf16.msra.mxu0 0
        %328 = vmatpush.bf16.msra.mxu0 0
        %329 = vmatpush.bf16.msra.mxu0 0
        %330 = vmatpush.bf16.msra.mxu0 0
        %331 = vmatpush.bf16.msra.mxu0 0
        %332 = vmatpush.bf16.msra.mxu0 0
        %333 = vmatpush.bf16.msra.mxu0 %v304
        %334 = vmatpush.bf16.msra.mxu0 %v302
        %335 = vmatmul.bf16.gmra.mxu0 %v311
        %v336 = vpop.f32.mrf.mxu0
        %v337 = vadd.f32 %v277, %v336
        %v338 = vpop.f32.mrf.mxu0
        %v339 = vadd.f32 %v282, %v338
        %340 = vdwg.mxu0
        %v341 = vmax.f32 %v323, 0.0
        %v342 = vmax.f32 %v337, 0.0
        %v343 = vmax.f32 %v325, 0.0
        %v344 = vmax.f32 %v339, 0.0
        %v345 = vld [vmem:[%s3] sm:$0xf]
        %v346 = vld [vmem:[%s3 + $0x4] sm:$0xf]
        %v347 = vld [vmem:[%s3 + $0x8] sm:$0xf]
        %v348 = vld [vmem:[%s3 + $0xc] sm:$0xf]
        %v349 = vpack.c.bf16 %v343, %v341
        %v350 = vpack.c.bf16 %v344, %v342
        %v351 = vld [vmem:[%s4] sm:$0xff]
        %v352 = vld [vmem:[%s4 + $0x8] sm:$0xff]
        %v353 = vld [vmem:[%s4 + $0x10] sm:$0xff]
        %v354 = vld [vmem:[%s4 + $0x18] sm:$0xff]
        %356 = vset.pattern.permute.xlu0 0
        %357 = vperm.xlu0 %356, %v351
        %v358 = vpop.permute.xlu0 %357
        %361 = vset.pattern.permute.xlu0 0
        %362 = vperm.xlu0 %361, %v352
        %v363 = vpop.permute.xlu0 %362
        %366 = vset.pattern.permute.xlu0 0
        %367 = vperm.xlu0 %366, %v353
        %v368 = vpop.permute.xlu0 %367
        %371 = vset.pattern.permute.xlu0 0
        %372 = vperm.xlu0 %371, %v354
        %v373 = vpop.permute.xlu0 %372
        %v379 = vunpack.c.l.b16 %v345
        %v380 = vunpack.c.l.b16 %v346
        %v381 = vunpack.c.l.b16 %v347
        %v382 = vunpack.c.l.b16 %v348
        %v383 = vpack.c.b16 %v380, %v379
        %v384 = vpack.c.b16 %v382, %v381
        %vm385 = vcmask 130048
        %v387 = vsel %vm385, %v383, 0
        %v390 = vsel %vm385, %v384, 0
        %392 = vmatpush.bf16.msra.mxu0 0
        %393 = vmatpush.bf16.msra.mxu0 0
        %394 = vmatpush.bf16.msra.mxu0 0
        %395 = vmatpush.bf16.msra.mxu0 0
        %396 = vmatpush.bf16.msra.mxu0 0
        %397 = vmatpush.bf16.msra.mxu0 0
        %398 = vmatpush.bf16.msra.mxu0 0
        %399 = vmatpush.bf16.msra.mxu0 %v349
        %400 = vmatmul.bf16.gmra.mxu0 %v387
        %v401 = vpop.f32.mrf.mxu0
        %v402 = vadd.f32 %v358, %v401
        %v403 = vpop.f32.mrf.mxu0
        %v404 = vadd.f32 %v363, %v403
        %405 = vmatmul.bf16.gmra.mxu0 %v390
        %v406 = vpop.f32.mrf.mxu0
        %v407 = vadd.f32 %v368, %v406
        %v408 = vpop.f32.mrf.mxu0
        %v409 = vadd.f32 %v373, %v408
        %410 = vdwg.mxu0
        %411 = vmatpush.bf16.msra.mxu0 0
        %412 = vmatpush.bf16.msra.mxu0 0
        %413 = vmatpush.bf16.msra.mxu0 0
        %414 = vmatpush.bf16.msra.mxu0 0
        %415 = vmatpush.bf16.msra.mxu0 0
        %416 = vmatpush.bf16.msra.mxu0 0
        %417 = vmatpush.bf16.msra.mxu0 0
        %418 = vmatpush.bf16.msra.mxu0 %v350
        %419 = vmatmul.bf16.gmra.mxu0 %v387
        %v420 = vpop.f32.mrf.mxu0
        %v421 = vadd.f32 %v358, %v420
        %v422 = vpop.f32.mrf.mxu0
        %v423 = vadd.f32 %v363, %v422
        %424 = vmatmul.bf16.gmra.mxu0 %v390
        %v425 = vpop.f32.mrf.mxu0
        %v426 = vadd.f32 %v368, %v425
        %v427 = vpop.f32.mrf.mxu0
        %v428 = vadd.f32 %v373, %v427
        %429 = vdwg.mxu0
        %v430 = vunpack.c.l.bf16 %v266
        %v431 = vunpack.c.h.bf16 %v266
        %v432 = vunpack.c.l.bf16 %v267
        %v433 = vunpack.c.h.bf16 %v267
        %v434 = vunpack.c.l.bf16 %v268
        %v435 = vunpack.c.h.bf16 %v268
        %v436 = vunpack.c.l.bf16 %v269
        %v437 = vunpack.c.h.bf16 %v269
        %v438 = vadd.f32 %v402, %v430
        %v439 = vadd.f32 %v421, %v431
        %v440 = vadd.f32 %v404, %v432
        %v441 = vadd.f32 %v423, %v433
        %v442 = vadd.f32 %v407, %v434
        %v443 = vadd.f32 %v426, %v435
        %v444 = vadd.f32 %v409, %v436
        %v445 = vadd.f32 %v428, %v437
        %v446 = vmax.f32 %v438, 0.0
        %v447 = vmax.f32 %v439, 0.0
        %v448 = vmax.f32 %v440, 0.0
        %v449 = vmax.f32 %v441, 0.0
        %v450 = vmax.f32 %v442, 0.0
        %v451 = vmax.f32 %v443, 0.0
        %v452 = vmax.f32 %v444, 0.0
        %v453 = vmax.f32 %v445, 0.0
        %v454 = vpack.c.bf16 %v447, %v446
        %v455 = vpack.c.bf16 %v449, %v448
        %v456 = vpack.c.bf16 %v451, %v450
        %v457 = vpack.c.bf16 %v453, %v452
        %458 = vst [vmem:[%s262] sm:$0xff] %v454
        %459 = vst [vmem:[%s262 + $0x8] sm:$0xff] %v455
        %460 = vst [vmem:[%s262 + $0x10] sm:$0xff] %v456
        %461 = vst [vmem:[%s262 + $0x18] sm:$0xff] %v457
        %s462 = sand.u32 %s156, 1
        %s463 = scalar_lea.sflag [#allocation4], %s462
        %s464 = sand.u32 %s156, 1
        %s465 = smul.addr %s464, 32
        %s466 = scalar_lea.vmem [#allocation5], %s465
        // Predicated region
        $region45: #{tpu_custom_call.1} parent=39 // pred_check
          %p467 = pneg %p166
        $region46: #{tpu_custom_call.1} parent=39 // pred_check_branch
          %469 = sbr.rel (%p467) target = $region48
        $region47: #{tpu_custom_call.1} parent=39 // pred_region
          %s470 = smul.u32 2, %s27
          %472 = vsyncadd %s463, 0
          %s473 = smul.addr %s26, 8
          %s474 = sadd.s32 %s470, %s473
          %s475 = smul.addr %s474, 4
          %s476 = scalar_lea.hbm %s5, %s475
          %s477 = sshll.u32 %s466, 4
          %s478 = int_to_ptr.vmem [resolvable:$true] %s477
          %s479 = sshll.u32 %s476, 4
          %s480 = int_to_ptr.hbm [resolvable:$true] %s479
          %485 = dma.vmem_to_hbm [thread:$0]  %s478, 512, %s480, %s463, 128, 128, 8
        $region48: #{tpu_custom_call.1} parent=39 // pred_fallthru
          _
      $region40: #{tpu_custom_call.1} parent=5 // pred_fallthru
        _
      %p486 = scmp.le.s32.totalorder 2, %s17
      // Predicated region
      $region49: #{tpu_custom_call.1} parent=5 // pred_check
        %p487 = pneg %p486
      $region50: #{tpu_custom_call.1} parent=5 // pred_check_branch
        %489 = sbr.rel (%p487) target = $region52
      $region51: #{tpu_custom_call.1} parent=5 // pred_region
        %s490 = ssub.s32 %s17, 2
        // Predicated region
        $region53: #{tpu_custom_call.1} parent=51 // pred_check
          %p491 = pneg %p172
        $region54: #{tpu_custom_call.1} parent=51 // pred_check_branch
          %493 = sbr.rel (%p491) target = $region56
        $region55: #{tpu_custom_call.1} parent=51 // pred_region
          %s494 = sand.u32 %s157, 1
          %s495 = scalar_lea.sflag [#allocation4], %s494
          %s496 = sand.u32 %s157, 1
          %s497 = smul.addr %s496, 32
          %s498 = scalar_lea.vmem [#allocation5], %s497
          %500 = dma.done %s495, 512
        $region56: #{tpu_custom_call.1} parent=51 // pred_fallthru
          _
      $region52: #{tpu_custom_call.1} parent=5 // pred_fallthru
        _
    $region6: #{tpu_custom_call.1} parent=1 // loop_footer
      %s21 = sadd.s32 1, %s17
    $region7: #{tpu_custom_call.1} parent=1 // loop_footer_branch
      %16 = sbr.rel target = $region3
    $region8: #{tpu_custom_call.1} parent=1 // loop_exit
      _
    %501 = vsyncpa [#allocation3], 1
    %s502 = scalar_lea.sflag [#allocation3], 1
    %503 = vsyncpa %s502, 1
    %504 = vsyncpa [#allocation4], 1
    %s505 = scalar_lea.sflag [#allocation4], 1
    %506 = vsyncpa %s505, 1

</llo_original>
